<compile_context>
chip_gen: v5e
topology: v5e:2x2
jax: 0.10.0
libtpu: 0.0.40
codegen_flags: <defaults>
</compile_context>

<pallas_src>
import jax
import jax.numpy as jnp
from jax.experimental import pallas as pl
from jax.experimental.pallas import tpu as pltpu

PACK = 8  # batch rows folded into the lane axis -> 8 * Dout = 128 (one vreg row)


def _net2_head_kernel(x_ref, w1_ref, b1_ref, w2_ref, b2_ref, o_ref):
    # Packed layer 1: Linear + ReLU (children -4, -3).  bf16 MXU, f32 accumulate.
    h = jnp.dot(x_ref[...], w1_ref[...], preferred_element_type=jnp.float32)
    h = jnp.maximum(h + b1_ref[...], 0.0)
    # Packed layer 2: Linear + ReLU (children -2, -1).
    o = jnp.dot(h.astype(w2_ref.dtype), w2_ref[...],
                preferred_element_type=jnp.float32)
    o = jnp.maximum(o + b2_ref[...], 0.0)
    o_ref[...] = o.astype(o_ref.dtype)


def net2_forward(x, w1, b1, w2, b2, *, block_rows=1024,
                 compute_dtype=jnp.bfloat16):
    """x: [B, Din]; w1: [Din, H]; b1: [1, H]; w2: [H, Dout]; b2: [1, Dout]."""
    B, Din = x.shape
    H = w1.shape[1]
    Dout = w2.shape[1]

    # ---- layout plumbing (plain JAX, outside the kernel) --------------------
    # Pad batch to a multiple of PACK, then fold PACK rows into the lane axis so
    # every in-kernel load/store is lane-dense (last dim multiple of 128).
    Bp = ((B + PACK - 1) // PACK) * PACK
    if Bp != B:
        x = jnp.pad(x, ((0, Bp - B), (0, 0)))
    Bw = Bp // PACK
    x_wide = x.reshape(Bw, PACK * Din).astype(compute_dtype)

    # Block-diagonal weights make the packed matmul equal PACK independent
    # per-row matmuls: kron(I_PACK, W).  Biases tile along the packed groups.
    eye = jnp.eye(PACK, dtype=compute_dtype)
    w1_wide = jnp.kron(eye, w1.astype(compute_dtype))        # [PACK*Din, PACK*H]
    w2_wide = jnp.kron(eye, w2.astype(compute_dtype))        # [PACK*H, PACK*Dout]
    b1_wide = jnp.tile(b1.astype(jnp.float32), (1, PACK))    # [1, PACK*H]
    b2_wide = jnp.tile(b2.astype(jnp.float32), (1, PACK))    # [1, PACK*Dout]

    # ---- batch tiling --------------------------------------------------------
    tmw = max(8, (block_rows // PACK) // 8 * 8)   # wide rows per grid step
    if tmw >= Bw:
        tmw = Bw                                  # single full-extent block
    grid = (pl.cdiv(Bw, tmw),)

    itemsize = jnp.dtype(compute_dtype).itemsize
    cost = pl.CostEstimate(
        flops=2 * Bp * (Din * H + H * Dout),
        transcendentals=0,
        bytes_accessed=(x_wide.size * itemsize
                        + (w1_wide.size + w2_wide.size) * itemsize
                        + (b1_wide.size + b2_wide.size) * 4
                        + Bw * PACK * Dout * 4),
    )

    out_wide = pl.pallas_call(
        _net2_head_kernel,
        out_shape=jax.ShapeDtypeStruct((Bw, PACK * Dout), jnp.float32),
        grid_spec=pl.GridSpec(
            grid=grid,
            in_specs=[
                pl.BlockSpec((tmw, PACK * Din), lambda i: (i, 0)),
                # Weights / biases: constant index_map -> resident across grid.
                pl.BlockSpec((PACK * Din, PACK * H), lambda i: (0, 0)),
                pl.BlockSpec((1, PACK * H), lambda i: (0, 0)),
                pl.BlockSpec((PACK * H, PACK * Dout), lambda i: (0, 0)),
                pl.BlockSpec((1, PACK * Dout), lambda i: (0, 0)),
            ],
            out_specs=pl.BlockSpec((tmw, PACK * Dout), lambda i: (i, 0)),
        ),
        compiler_params=pltpu.CompilerParams(
            dimension_semantics=("parallel",)),   # megacore-shard batch on v7x
        cost_estimate=cost,
    )(x_wide, w1_wide, b1_wide, w2_wide, b2_wide)

    # Undo the lane packing / padding (pure layout, outside the kernel).
    return out_wide.reshape(Bp, Dout)[:B]


def net2_reference(x, w1, b1, w2, b2):
    h = jnp.maximum(x @ w1 + b1, 0.0)
    return jnp.maximum(h @ w2 + b2, 0.0)


if __name__ == "__main__":
    B, DIN, H, DOUT = 250, 64, 32, 16   # B not a multiple of 8: exercises padding

    key = jax.random.PRNGKey(0)
    kx, kw1, kb1, kw2, kb2 = jax.random.split(key, 5)

    x = jax.random.normal(kx, (B, DIN), dtype=jnp.float32)

    # PyTorch nn.Linear weights are [out, in]; init deterministically, then
    # transpose to [in, out] for the kernel (glue in plain JAX).
    w1_torch = jax.random.normal(kw1, (H, DIN), dtype=jnp.float32) * 0.05
    b1 = jax.random.normal(kb1, (1, H), dtype=jnp.float32) * 0.05
    w2_torch = jax.random.normal(kw2, (DOUT, H), dtype=jnp.float32) * 0.05
    b2 = jax.random.normal(kb2, (1, DOUT), dtype=jnp.float32) * 0.05

    w1 = w1_torch.T  # [DIN, H]
    w2 = w2_torch.T  # [H, DOUT]

    # Small block_rows so the demo actually runs a multi-step pipelined grid.
    out = net2_forward(x, w1, b1, w2, b2, block_rows=64)
    out = jax.block_until_ready(out)

    ref = net2_reference(x, w1, b1, w2, b2)
    assert out.shape == (B, DOUT), out.shape
    # bf16 inputs/weights with f32 accumulation -> loosened tolerance vs f32 ref.
    assert jnp.allclose(out, ref, atol=3e-2, rtol=3e-2), "mismatch vs reference"

    print("KERNEL_OK")
</pallas_src>

<mosaic_0001>
module attributes {stable_mosaic.version = 11 : i64} {
  func.func @_net2_head_kernel(%arg0: i32, %arg1: memref<8x512xbf16, #tpu.memory_space<vmem>>, %arg2: memref<512x256xbf16, #tpu.memory_space<vmem>>, %arg3: memref<1x256xf32, #tpu.memory_space<vmem>>, %arg4: memref<256x128xbf16, #tpu.memory_space<vmem>>, %arg5: memref<1x128xf32, #tpu.memory_space<vmem>>, %arg6: memref<8x128xf32, #tpu.memory_space<vmem>>) attributes {dimension_semantics = [#tpu.dimension_semantics<parallel>], iteration_bounds = array<i64: 4>, scalar_prefetch = 0 : i64, scratch_operands = 0 : i64, tpu.core_type = #tpu.core_type<tc>, window_params = [{transform_indices = @transform_0, window_bounds = array<i64: 8, 512>}, {pipeline_mode = #tpu.pipeline_mode<synchronous>, transform_indices = @transform_1, window_bounds = array<i64: 512, 256>}, {pipeline_mode = #tpu.pipeline_mode<synchronous>, transform_indices = @transform_2, window_bounds = array<i64: 1, 256>}, {pipeline_mode = #tpu.pipeline_mode<synchronous>, transform_indices = @transform_3, window_bounds = array<i64: 256, 128>}, {pipeline_mode = #tpu.pipeline_mode<synchronous>, transform_indices = @transform_4, window_bounds = array<i64: 1, 128>}, {transform_indices = @transform_5, window_bounds = array<i64: 8, 128>}]} {
    %c0 = arith.constant 0 : index
    %c0_0 = arith.constant 0 : index
    %0 = vector.load %arg1[%c0, %c0_0] : memref<8x512xbf16, #tpu.memory_space<vmem>>, vector<8x512xbf16>
    %c0_1 = arith.constant 0 : index
    %c0_2 = arith.constant 0 : index
    %1 = vector.load %arg2[%c0_1, %c0_2] : memref<512x256xbf16, #tpu.memory_space<vmem>>, vector<512x256xbf16>
    %cst = arith.constant dense<0.000000e+00> : vector<8x256xf32>
    %2 = tpu.matmul %0, %1, %cst {dimension_numbers = #tpu.dot_dimension_numbers<[1], [0], [0], [1], [0, 0, 1, 1], [], []>} : vector<8x512xbf16>, vector<512x256xbf16>, vector<8x256xf32> -> vector<8x256xf32>
    %c0_3 = arith.constant 0 : index
    %c0_4 = arith.constant 0 : index
    %3 = vector.load %arg3[%c0_3, %c0_4] : memref<1x256xf32, #tpu.memory_space<vmem>>, vector<1x256xf32>
    %4 = vector.broadcast %3 : vector<1x256xf32> to vector<8x256xf32>
    %5 = arith.addf %2, %4 : vector<8x256xf32>
    %cst_5 = arith.constant 0.000000e+00 : f32
    %6 = vector.broadcast %cst_5 : f32 to vector<8x256xf32>
    %7 = arith.maximumf %5, %6 : vector<8x256xf32>
    %8 = arith.truncf %7 : vector<8x256xf32> to vector<8x256xbf16>
    %c0_6 = arith.constant 0 : index
    %c0_7 = arith.constant 0 : index
    %9 = vector.load %arg4[%c0_6, %c0_7] : memref<256x128xbf16, #tpu.memory_space<vmem>>, vector<256x128xbf16>
    %cst_8 = arith.constant dense<0.000000e+00> : vector<8x128xf32>
    %10 = tpu.matmul %8, %9, %cst_8 {dimension_numbers = #tpu.dot_dimension_numbers<[1], [0], [0], [1], [0, 0, 1, 1], [], []>} : vector<8x256xbf16>, vector<256x128xbf16>, vector<8x128xf32> -> vector<8x128xf32>
    %c0_9 = arith.constant 0 : index
    %c0_10 = arith.constant 0 : index
    %11 = vector.load %arg5[%c0_9, %c0_10] : memref<1x128xf32, #tpu.memory_space<vmem>>, vector<1x128xf32>
    %12 = vector.broadcast %11 : vector<1x128xf32> to vector<8x128xf32>
    %13 = arith.addf %10, %12 : vector<8x128xf32>
    %cst_11 = arith.constant 0.000000e+00 : f32
    %14 = vector.broadcast %cst_11 : f32 to vector<8x128xf32>
    %15 = arith.maximumf %13, %14 : vector<8x128xf32>
    %c0_12 = arith.constant 0 : index
    %c0_13 = arith.constant 0 : index
    %16 = vector.load %arg6[%c0_12, %c0_13] : memref<8x128xf32, #tpu.memory_space<vmem>>, vector<8x128xf32>
    tpu.vector_store %arg6[%c0_12, %c0_13], %15 {strides = array<i32>} : memref<8x128xf32, #tpu.memory_space<vmem>>, vector<8x128xf32>,
    return
  }
  func.func @transform_0(%arg0: i32) -> (i32, i32) {
    %c0_i32 = arith.constant 0 : i32
    %c0_i32_0 = arith.constant 0 : i32
    return %arg0, %c0_i32 : i32, i32
  }
  func.func @transform_1(%arg0: i32) -> (i32, i32) {
    %c0_i32 = arith.constant 0 : i32
    %c0_i32_0 = arith.constant 0 : i32
    %c0_i32_1 = arith.constant 0 : i32
    return %c0_i32, %c0_i32_0 : i32, i32
  }
  func.func @transform_2(%arg0: i32) -> (i32, i32) {
    %c0_i32 = arith.constant 0 : i32
    %c0_i32_0 = arith.constant 0 : i32
    %c0_i32_1 = arith.constant 0 : i32
    return %c0_i32, %c0_i32_0 : i32, i32
  }
  func.func @transform_3(%arg0: i32) -> (i32, i32) {
    %c0_i32 = arith.constant 0 : i32
    %c0_i32_0 = arith.constant 0 : i32
    %c0_i32_1 = arith.constant 0 : i32
    return %c0_i32, %c0_i32_0 : i32, i32
  }
  func.func @transform_4(%arg0: i32) -> (i32, i32) {
    %c0_i32 = arith.constant 0 : i32
    %c0_i32_0 = arith.constant 0 : i32
    %c0_i32_1 = arith.constant 0 : i32
    return %c0_i32, %c0_i32_0 : i32, i32
  }
  func.func @transform_5(%arg0: i32) -> (i32, i32) {
    %c0_i32 = arith.constant 0 : i32
    %c0_i32_0 = arith.constant 0 : i32
    return %arg0, %c0_i32 : i32, i32
  }
}

</mosaic_0001>

<llo_original>
// kernel: tpu_custom_call.1
$region0: #{tpu_custom_call.1}
  #allocation0 [shape = 'u32[]', space=smem, size = 0x4, offset = 0x4, fixed_abs, tag = 'smem constant byte address 0x4 - core index']
  #allocation1 [shape = 'u32[72,128]{1,0:T(1,128)}', space=vmem, size = 0x9000, scoped, tag = 'internal scratch']
  %s0 = inlined_call_operand.hbm [shape: bf16[32,512], index: 0, kind: input, shape index: {}]
  %s1 = inlined_call_operand.hbm [shape: bf16[512,256], index: 1, kind: input, shape index: {}]
  %s2 = inlined_call_operand.hbm [shape: f32[1,256], index: 2, kind: input, shape index: {}]
  %s3 = inlined_call_operand.hbm [shape: bf16[256,128], index: 3, kind: input, shape index: {}]
  %s4 = inlined_call_operand.vmem [shape: f32[1,128], index: 4, kind: input, shape index: {}]
  %s5 = inlined_call_operand.hbm [shape: f32[32,128], index: 5, kind: output, shape index: {}]
  %s6 = sld [smem:[#allocation0]]
  $region69: #{tpu_custom_call.1} parent=0
    _
  %s8 = ssub.s32 1, %s6
  %s9 = scalar_select 0, %s8, %s6
  $region1: #{tpu_custom_call.1} parent=0
    #allocation2 [shape = 'u8[16384]{0}', space=vmem, size = 0x4000, scoped, tag = 'input window, operand 0']
    #allocation3 [shape = 's32[2]{0}', space=sflag, size = 0x8, scoped, tag = 'scoped memory for tpu_custom_call.1']
    #allocation4 [shape = 's32[2]{0}', space=sflag, size = 0x8, scoped, tag = 'scoped memory for tpu_custom_call.1']
    #allocation5 [shape = 'u8[262144]{0}', space=vmem, size = 0x40000, scoped, tag = 'input window, operand 1, single buffered']
    #allocation6 [shape = 's32[1]{0}', space=sflag, size = 0x4, scoped, tag = 'scoped memory for tpu_custom_call.1']
    #allocation7 [shape = 'u8[1024]{0}', space=vmem, size = 0x400, scoped, tag = 'input window, operand 2, single buffered']
    #allocation8 [shape = 'u8[65536]{0}', space=vmem, size = 0x10000, scoped, tag = 'input window, operand 3, single buffered']
    #allocation9 [shape = 's32[1]{0}', space=sflag, size = 0x4, scoped, tag = 'scoped memory for tpu_custom_call.1']
    #allocation10 [shape = 'u8[8192]{0}', space=vmem, size = 0x2000, scoped, tag = 'output window, operand 0']
    %10 = vsyncpa [#allocation3], 0
    %s11 = scalar_lea.sflag [#allocation3], 1
    %12 = vsyncpa %s11, 0
    %13 = vsyncpa [#allocation6], 0
    %14 = vsyncpa [#allocation9], 0
    %15 = vsyncpa [#allocation4], 0
    %s16 = scalar_lea.sflag [#allocation4], 1
    %17 = vsyncpa %s16, 0
    loop: start=0, step=1, limit=6
    $region2: #{tpu_custom_call.1} parent=1 // loop_pre_header
      _
    $region3: #{tpu_custom_call.1} parent=1 // loop_header
      %s19 = sphi 0, %s23
      %p20 = scmp.ge.s32.totalorder %s19, 6
      %s29 = sphi 0, %s31
      %s32 = sphi 0, %s29
      %s33 = sphi 0, %s32
      %s49 = sphi 0, %s33
      %s53 = sphi 0, %s53
      %s55 = sphi 0, %s53
      %s56 = sphi 0, %s55
      %s70 = sphi 0, %s56
      %s74 = sphi 0, %s74
      %s76 = sphi 0, %s74
      %s77 = sphi 0, %s76
      %s91 = sphi 0, %s77
      %s95 = sphi 0, %s95
      %s97 = sphi 0, %s95
      %s98 = sphi 0, %s97
      %s112 = sphi 0, %s98
      %s116 = sphi 0, %s116
      %s118 = sphi 0, %s116
      %s119 = sphi 0, %s118
      %s133 = sphi 0, %s119
      %s139 = sphi 0, %s141
      %s142 = sphi 0, %s139
      %s143 = sphi 0, %s142
      %s159 = sphi 0, %s143
    $region4: #{tpu_custom_call.1} parent=1 // loop_header_branch
      %22 = sbr.rel (%p20) target = $region8
    $region5: #{tpu_custom_call.1} parent=1 // loop_body
      %s24 = ssub.s32 %s19, 1
      %s25 = ssub.s32 %s19, 2
      %s26 = sadd.s32 %s19, 1
      %s27 = ssub.s32 %s19, %s26
      %p28 = scmp.eq.s32.totalorder %s27, 0
      %s30 = sadd.s32 %s29, 1
      %s31 = scalar_select %p28, %s29, %s30
      %p34 = pneg %p28
      %p35 = scmp.eq.s32.totalorder %s19, 3
      %p36 = por %p34, %p35
      %p37 = scmp.ne.s32.totalorder %s29, %s32
      %p38 = scmp.eq.s32.totalorder %s19, 0
      %p39 = por %p37, %p38
      %p40 = scmp.ne.s32.totalorder %s29, %s32
      %p41 = scmp.eq.s32.totalorder %s24, 3
      %p42 = por %p40, %p41
      %p43 = scmp.ne.s32.totalorder %s32, %s33
      %p44 = scmp.eq.s32.totalorder %s24, 0
      %p45 = por %p43, %p44
      %p46 = scmp.ne.s32.totalorder %s32, %s33
      %p47 = scmp.eq.s32.totalorder %s25, 3
      %p48 = por %p46, %p47
      %p50 = scmp.ne.s32.totalorder %s33, %s49
      %p51 = scmp.eq.s32.totalorder %s25, 0
      %p52 = por %p50, %p51
      %s54 = sadd.s32 %s53, 1
      %p57 = scmp.eq.s32.totalorder %s19, 3
      %p58 = scmp.ne.s32.totalorder %s53, %s55
      %p59 = scmp.eq.s32.totalorder %s19, 0
      %p60 = por %p58, %p59
      %p61 = scmp.ne.s32.totalorder %s53, %s55
      %p62 = scmp.eq.s32.totalorder %s24, 3
      %p63 = por %p61, %p62
      %p64 = scmp.ne.s32.totalorder %s55, %s56
      %p65 = scmp.eq.s32.totalorder %s24, 0
      %p66 = por %p64, %p65
      %p67 = scmp.ne.s32.totalorder %s55, %s56
      %p68 = scmp.eq.s32.totalorder %s25, 3
      %p69 = por %p67, %p68
      %p71 = scmp.ne.s32.totalorder %s56, %s70
      %p72 = scmp.eq.s32.totalorder %s25, 0
      %p73 = por %p71, %p72
      %s75 = sadd.s32 %s74, 1
      %p78 = scmp.eq.s32.totalorder %s19, 3
      %p79 = scmp.ne.s32.totalorder %s74, %s76
      %p80 = scmp.eq.s32.totalorder %s19, 0
      %p81 = por %p79, %p80
      %p82 = scmp.ne.s32.totalorder %s74, %s76
      %p83 = scmp.eq.s32.totalorder %s24, 3
      %p84 = por %p82, %p83
      %p85 = scmp.ne.s32.totalorder %s76, %s77
      %p86 = scmp.eq.s32.totalorder %s24, 0
      %p87 = por %p85, %p86
      %p88 = scmp.ne.s32.totalorder %s76, %s77
      %p89 = scmp.eq.s32.totalorder %s25, 3
      %p90 = por %p88, %p89
      %p92 = scmp.ne.s32.totalorder %s77, %s91
      %p93 = scmp.eq.s32.totalorder %s25, 0
      %p94 = por %p92, %p93
      %s96 = sadd.s32 %s95, 1
      %p99 = scmp.eq.s32.totalorder %s19, 3
      %p100 = scmp.ne.s32.totalorder %s95, %s97
      %p101 = scmp.eq.s32.totalorder %s19, 0
      %p102 = por %p100, %p101
      %p103 = scmp.ne.s32.totalorder %s95, %s97
      %p104 = scmp.eq.s32.totalorder %s24, 3
      %p105 = por %p103, %p104
      %p106 = scmp.ne.s32.totalorder %s97, %s98
      %p107 = scmp.eq.s32.totalorder %s24, 0
      %p108 = por %p106, %p107
      %p109 = scmp.ne.s32.totalorder %s97, %s98
      %p110 = scmp.eq.s32.totalorder %s25, 3
      %p111 = por %p109, %p110
      %p113 = scmp.ne.s32.totalorder %s98, %s112
      %p114 = scmp.eq.s32.totalorder %s25, 0
      %p115 = por %p113, %p114
      %s117 = sadd.s32 %s116, 1
      %p120 = scmp.eq.s32.totalorder %s19, 3
      %p121 = scmp.ne.s32.totalorder %s116, %s118
      %p122 = scmp.eq.s32.totalorder %s19, 0
      %p123 = por %p121, %p122
      %p124 = scmp.ne.s32.totalorder %s116, %s118
      %p125 = scmp.eq.s32.totalorder %s24, 3
      %p126 = por %p124, %p125
      %p127 = scmp.ne.s32.totalorder %s118, %s119
      %p128 = scmp.eq.s32.totalorder %s24, 0
      %p129 = por %p127, %p128
      %p130 = scmp.ne.s32.totalorder %s118, %s119
      %p131 = scmp.eq.s32.totalorder %s25, 3
      %p132 = por %p130, %p131
      %p134 = scmp.ne.s32.totalorder %s119, %s133
      %p135 = scmp.eq.s32.totalorder %s25, 0
      %p136 = por %p134, %p135
      %s137 = ssub.s32 %s19, %s26
      %p138 = scmp.eq.s32.totalorder %s137, 0
      %s140 = sadd.s32 %s139, 1
      %s141 = scalar_select %p138, %s139, %s140
      %p144 = pneg %p138
      %p145 = scmp.eq.s32.totalorder %s19, 3
      %p146 = por %p144, %p145
      %p147 = scmp.ne.s32.totalorder %s139, %s142
      %p148 = scmp.eq.s32.totalorder %s19, 0
      %p149 = por %p147, %p148
      %p150 = scmp.ne.s32.totalorder %s139, %s142
      %p151 = scmp.eq.s32.totalorder %s24, 3
      %p152 = por %p150, %p151
      %p153 = scmp.ne.s32.totalorder %s142, %s143
      %p154 = scmp.eq.s32.totalorder %s24, 0
      %p155 = por %p153, %p154
      %p156 = scmp.ne.s32.totalorder %s142, %s143
      %p157 = scmp.eq.s32.totalorder %s25, 3
      %p158 = por %p156, %p157
      %p160 = scmp.ne.s32.totalorder %s143, %s159
      %p161 = scmp.eq.s32.totalorder %s25, 0
      %p162 = por %p160, %p161
      %p163 = scmp.le.s32.totalorder 1, %s19
      %p164 = scmp.lt.s32.totalorder %s19, 5
      %p165 = pnand %p163, %p164
      %p166 = pneg %p165
      // Predicated region
      $region9: #{tpu_custom_call.1} parent=5 // pred_check
        _
      $region10: #{tpu_custom_call.1} parent=5 // pred_check_branch
        %168 = sbr.rel (%p165) target = $region12
      $region11: #{tpu_custom_call.1} parent=5 // pred_region
        %s169 = ssub.s32 %s19, 1
        // Predicated region
        $region13: #{tpu_custom_call.1} parent=11 // pred_check
          %p170 = pneg %p66
        $region14: #{tpu_custom_call.1} parent=11 // pred_check_branch
          %172 = sbr.rel (%p170) target = $region16
        $region15: #{tpu_custom_call.1} parent=11 // pred_region
          %174 = vsyncadd [#allocation6], 0
          %s175 = sshll.u32 %s1, 4
          %s176 = int_to_ptr.hbm [resolvable:$true] %s175
          %s177 = sshll.u32 [#allocation5], 4
          %s178 = int_to_ptr.vmem [resolvable:$true] %s177
          %183 = dma.hbm_to_vmem [thread:$0]  %s176, 8192, %s178, [#allocation6], 128, 128, 8
        $region16: #{tpu_custom_call.1} parent=11 // pred_fallthru
          _
        // Predicated region
        $region17: #{tpu_custom_call.1} parent=11 // pred_check
          %p184 = pneg %p87
        $region18: #{tpu_custom_call.1} parent=11 // pred_check_branch
          %186 = sbr.rel (%p184) target = $region20
        $region19: #{tpu_custom_call.1} parent=11 // pred_region
          %188 = vsyncadd [#allocation6], 0
          %s190 = sshll.u32 %s2, 4
          %s191 = int_to_ptr.hbm [resolvable:$true] %s190
          %s192 = sshll.u32 [#allocation7], 4
          %s193 = int_to_ptr.vmem [resolvable:$true] %s192
          %195 = dma.hbm_to_vmem [thread:$0]  %s191, 32, %s193, [#allocation6]
        $region20: #{tpu_custom_call.1} parent=11 // pred_fallthru
          _
        // Predicated region
        $region21: #{tpu_custom_call.1} parent=11 // pred_check
          %p196 = pneg %p108
        $region22: #{tpu_custom_call.1} parent=11 // pred_check_branch
          %198 = sbr.rel (%p196) target = $region24
        $region23: #{tpu_custom_call.1} parent=11 // pred_region
          %200 = vsyncadd [#allocation9], 0
          %s201 = sshll.u32 %s3, 4
          %s202 = int_to_ptr.hbm [resolvable:$true] %s201
          %s203 = sshll.u32 [#allocation8], 4
          %s204 = int_to_ptr.vmem [resolvable:$true] %s203
          %209 = dma.hbm_to_vmem [thread:$0]  %s202, 2048, %s204, [#allocation9], 64, 64, 4
        $region24: #{tpu_custom_call.1} parent=11 // pred_fallthru
          _
        // Predicated region
        $region25: #{tpu_custom_call.1} parent=11 // pred_check
          %p210 = pneg %p129
        $region26: #{tpu_custom_call.1} parent=11 // pred_check_branch
          %212 = sbr.rel (%p210) target = $region28
        $region27: #{tpu_custom_call.1} parent=11 // pred_region
          _
        $region28: #{tpu_custom_call.1} parent=11 // pred_fallthru
          _
      $region12: #{tpu_custom_call.1} parent=5 // pred_fallthru
        _
      %p213 = scmp.lt.s32.totalorder %s19, 4
      // Predicated region
      $region29: #{tpu_custom_call.1} parent=5 // pred_check
        %p214 = pneg %p213
      $region30: #{tpu_custom_call.1} parent=5 // pred_check_branch
        %216 = sbr.rel (%p214) target = $region32
      $region31: #{tpu_custom_call.1} parent=5 // pred_region
        // Predicated region
        $region33: #{tpu_custom_call.1} parent=31 // pred_check
          %p217 = pneg %p39
        $region34: #{tpu_custom_call.1} parent=31 // pred_check_branch
          %219 = sbr.rel (%p217) target = $region36
        $region35: #{tpu_custom_call.1} parent=31 // pred_region
          %s220 = sand.u32 %s29, 1
          %s221 = scalar_lea.sflag [#allocation3], %s220
          %s222 = sand.u32 %s29, 1
          %s223 = smul.addr %s222, 16
          %s224 = scalar_lea.vmem [#allocation2], %s223
          %226 = vsyncadd %s221, 0
          %s227 = smul.addr %s19, 4
          %s228 = smul.addr %s227, 4
          %s229 = scalar_lea.hbm %s0, %s228
          %s231 = sshll.u32 %s229, 4
          %s232 = int_to_ptr.hbm [resolvable:$true] %s231
          %s233 = sshll.u32 %s224, 4
          %s234 = int_to_ptr.vmem [resolvable:$true] %s233
          %236 = dma.hbm_to_vmem [thread:$0]  %s232, 256, %s234, %s221
        $region36: #{tpu_custom_call.1} parent=31 // pred_fallthru
          _
      $region32: #{tpu_custom_call.1} parent=5 // pred_fallthru
        _
      %p237 = scmp.le.s32.totalorder 1, %s19
      %p238 = scmp.lt.s32.totalorder %s19, 5
      %p239 = pnand %p237, %p238
      %p240 = pneg %p239
      // Predicated region
      $region37: #{tpu_custom_call.1} parent=5 // pred_check
        _
      $region38: #{tpu_custom_call.1} parent=5 // pred_check_branch
        %242 = sbr.rel (%p239) target = $region40
      $region39: #{tpu_custom_call.1} parent=5 // pred_region
        %s243 = ssub.s32 %s19, 1
        %s244 = sand.u32 %s32, 1
        %s245 = scalar_lea.sflag [#allocation3], %s244
        %s246 = sand.u32 %s32, 1
        %s247 = smul.addr %s246, 16
        %s248 = scalar_lea.vmem [#allocation2], %s247
        // Predicated region
        $region41: #{tpu_custom_call.1} parent=39 // pred_check
          %p249 = pneg %p45
        $region42: #{tpu_custom_call.1} parent=39 // pred_check_branch
          %251 = sbr.rel (%p249) target = $region44
        $region43: #{tpu_custom_call.1} parent=39 // pred_region
          %253 = dma.done %s245, 256
        $region44: #{tpu_custom_call.1} parent=39 // pred_fallthru
          _
        // Predicated region
        $region45: #{tpu_custom_call.1} parent=39 // pred_check
          %p254 = pneg %p66
        $region46: #{tpu_custom_call.1} parent=39 // pred_check_branch
          %256 = sbr.rel (%p254) target = $region48
        $region47: #{tpu_custom_call.1} parent=39 // pred_region
          %258 = dma.done [#allocation6], 8192
        $region48: #{tpu_custom_call.1} parent=39 // pred_fallthru
          _
        // Predicated region
        $region49: #{tpu_custom_call.1} parent=39 // pred_check
          %p259 = pneg %p87
        $region50: #{tpu_custom_call.1} parent=39 // pred_check_branch
          %261 = sbr.rel (%p259) target = $region52
        $region51: #{tpu_custom_call.1} parent=39 // pred_region
          %263 = dma.done [#allocation6], 32
        $region52: #{tpu_custom_call.1} parent=39 // pred_fallthru
          _
        // Predicated region
        $region53: #{tpu_custom_call.1} parent=39 // pred_check
          %p264 = pneg %p108
        $region54: #{tpu_custom_call.1} parent=39 // pred_check_branch
          %266 = sbr.rel (%p264) target = $region56
        $region55: #{tpu_custom_call.1} parent=39 // pred_region
          %268 = dma.done [#allocation9], 2048
        $region56: #{tpu_custom_call.1} parent=39 // pred_fallthru
          _
        %s269 = sand.u32 %s32, 1
        %s270 = scalar_lea.sflag [#allocation3], %s269
        %s271 = sand.u32 %s32, 1
        %s272 = smul.addr %s271, 16
        %s273 = scalar_lea.vmem [#allocation2], %s272
        %p274 = pneg %p45
        %p275 = pneg %p42
        %p276 = pneg %p66
        %p277 = pneg %p63
        %p278 = pneg %p87
        %p279 = pneg %p84
        %p280 = pneg %p108
        %p281 = pneg %p105
        %p282 = pneg %p129
        %p283 = pneg %p126
        %p284 = pneg %p155
        %p285 = pneg %p152
        %s286 = sand.u32 %s142, 1
        %s287 = scalar_lea.sflag [#allocation4], %s286
        %s288 = sand.u32 %s142, 1
        %s289 = smul.addr %s288, 8
        %s290 = scalar_lea.vmem [#allocation10], %s289
        %v291 = vld [vmem:[%s248] sm:$0xff]
        %v292 = vld [vmem:[%s248 + $0x8] sm:$0xff]
        %v293 = vld [vmem:[#allocation5] sm:$0xff]
        %v294 = vld [vmem:[#allocation5 + $0x8] sm:$0xff]
        %v295 = vld [vmem:[#allocation5 + $0x10] sm:$0xff]
        %v296 = vld [vmem:[#allocation5 + $0x18] sm:$0xff]
        %v297 = vld [vmem:[#allocation5 + $0x20] sm:$0xff]
        %v298 = vld [vmem:[#allocation5 + $0x28] sm:$0xff]
        %v299 = vld [vmem:[#allocation5 + $0x30] sm:$0xff]
        %v300 = vld [vmem:[#allocation5 + $0x38] sm:$0xff]
        %v301 = vld [vmem:[#allocation5 + $0x40] sm:$0xff]
        %v302 = vld [vmem:[#allocation5 + $0x48] sm:$0xff]
        %v303 = vld [vmem:[#allocation5 + $0x50] sm:$0xff]
        %v304 = vld [vmem:[#allocation5 + $0x58] sm:$0xff]
        %v305 = vld [vmem:[#allocation5 + $0x60] sm:$0xff]
        %v306 = vld [vmem:[#allocation5 + $0x68] sm:$0xff]
        %v307 = vld [vmem:[#allocation5 + $0x70] sm:$0xff]
        %v308 = vld [vmem:[#allocation5 + $0x78] sm:$0xff]
        %v309 = vld [vmem:[#allocation5 + $0x80] sm:$0xff]
        %v310 = vld [vmem:[#allocation5 + $0x88] sm:$0xff]
        %v311 = vld [vmem:[#allocation5 + $0x90] sm:$0xff]
        %v312 = vld [vmem:[#allocation5 + $0x98] sm:$0xff]
        %v313 = vld [vmem:[#allocation5 + $0xa0] sm:$0xff]
        %v314 = vld [vmem:[#allocation5 + $0xa8] sm:$0xff]
        %v315 = vld [vmem:[#allocation5 + $0xb0] sm:$0xff]
        %v316 = vld [vmem:[#allocation5 + $0xb8] sm:$0xff]
        %v317 = vld [vmem:[#allocation5 + $0xc0] sm:$0xff]
        %v318 = vld [vmem:[#allocation5 + $0xc8] sm:$0xff]
        %v319 = vld [vmem:[#allocation5 + $0xd0] sm:$0xff]
        %v320 = vld [vmem:[#allocation5 + $0xd8] sm:$0xff]
        %v321 = vld [vmem:[#allocation5 + $0xe0] sm:$0xff]
        %v322 = vld [vmem:[#allocation5 + $0xe8] sm:$0xff]
        %v323 = vld [vmem:[#allocation5 + $0xf0] sm:$0xff]
        %v324 = vld [vmem:[#allocation5 + $0xf8] sm:$0xff]
        %v325 = vld [vmem:[#allocation5 + $0x100] sm:$0xff]
        %v326 = vld [vmem:[#allocation5 + $0x108] sm:$0xff]
        %v327 = vld [vmem:[#allocation5 + $0x110] sm:$0xff]
        %v328 = vld [vmem:[#allocation5 + $0x118] sm:$0xff]
        %v329 = vld [vmem:[#allocation5 + $0x120] sm:$0xff]
        %v330 = vld [vmem:[#allocation5 + $0x128] sm:$0xff]
        %v331 = vld [vmem:[#allocation5 + $0x130] sm:$0xff]
        %v332 = vld [vmem:[#allocation5 + $0x138] sm:$0xff]
        %v333 = vld [vmem:[#allocation5 + $0x140] sm:$0xff]
        %v334 = vld [vmem:[#allocation5 + $0x148] sm:$0xff]
        %v335 = vld [vmem:[#allocation5 + $0x150] sm:$0xff]
        %v336 = vld [vmem:[#allocation5 + $0x158] sm:$0xff]
        %v337 = vld [vmem:[#allocation5 + $0x160] sm:$0xff]
        %v338 = vld [vmem:[#allocation5 + $0x168] sm:$0xff]
        %v339 = vld [vmem:[#allocation5 + $0x170] sm:$0xff]
        %v340 = vld [vmem:[#allocation5 + $0x178] sm:$0xff]
        %v341 = vld [vmem:[#allocation5 + $0x180] sm:$0xff]
        %v342 = vld [vmem:[#allocation5 + $0x188] sm:$0xff]
        %v343 = vld [vmem:[#allocation5 + $0x190] sm:$0xff]
        %v344 = vld [vmem:[#allocation5 + $0x198] sm:$0xff]
        %v345 = vld [vmem:[#allocation5 + $0x1a0] sm:$0xff]
        %v346 = vld [vmem:[#allocation5 + $0x1a8] sm:$0xff]
        %v347 = vld [vmem:[#allocation5 + $0x1b0] sm:$0xff]
        %v348 = vld [vmem:[#allocation5 + $0x1b8] sm:$0xff]
        %v349 = vld [vmem:[#allocation5 + $0x1c0] sm:$0xff]
        %v350 = vld [vmem:[#allocation5 + $0x1c8] sm:$0xff]
        %v351 = vld [vmem:[#allocation5 + $0x1d0] sm:$0xff]
        %v352 = vld [vmem:[#allocation5 + $0x1d8] sm:$0xff]
        %v353 = vld [vmem:[#allocation5 + $0x1e0] sm:$0xff]
        %v354 = vld [vmem:[#allocation5 + $0x1e8] sm:$0xff]
        %v355 = vld [vmem:[#allocation5 + $0x1f0] sm:$0xff]
        %v356 = vld [vmem:[#allocation5 + $0x1f8] sm:$0xff]
        %v357 = vld [vmem:[#allocation7] sm:$0x3]
        %v359 = vperm.slane %v357, 0
        %v360 = vperm.slane %v357, 1
        %v365 = vunpack.c.l.b16 %v291
        %v366 = vunpack.c.h.b16 %v291
        %v367 = vunpack.c.l.b16 %v292
        %v368 = vunpack.c.h.b16 %v292
        %v369 = vpack.c.b16 %v365, %v365
        %v370 = vpack.c.b16 %v366, %v366
        %v371 = vpack.c.b16 %v367, %v367
        %v372 = vpack.c.b16 %v368, %v368
        %v441 = vunpack.c.l.b16 %v293
        %v442 = vunpack.c.h.b16 %v293
        %v443 = vunpack.c.l.b16 %v294
        %v444 = vunpack.c.h.b16 %v294
        %v445 = vunpack.c.l.b16 %v295
        %v446 = vunpack.c.h.b16 %v295
        %v447 = vunpack.c.l.b16 %v296
        %v448 = vunpack.c.h.b16 %v296
        %v449 = vunpack.c.l.b16 %v297
        %v450 = vunpack.c.h.b16 %v297
        %v451 = vunpack.c.l.b16 %v298
        %v452 = vunpack.c.h.b16 %v298
        %v453 = vunpack.c.l.b16 %v299
        %v454 = vunpack.c.h.b16 %v299
        %v455 = vunpack.c.l.b16 %v300
        %v456 = vunpack.c.h.b16 %v300
        %v457 = vunpack.c.l.b16 %v301
        %v458 = vunpack.c.h.b16 %v301
        %v459 = vunpack.c.l.b16 %v302
        %v460 = vunpack.c.h.b16 %v302
        %v461 = vunpack.c.l.b16 %v303
        %v462 = vunpack.c.h.b16 %v303
        %v463 = vunpack.c.l.b16 %v304
        %v464 = vunpack.c.h.b16 %v304
        %v465 = vunpack.c.l.b16 %v305
        %v466 = vunpack.c.h.b16 %v305
        %v467 = vunpack.c.l.b16 %v306
        %v468 = vunpack.c.h.b16 %v306
        %v469 = vunpack.c.l.b16 %v307
        %v470 = vunpack.c.h.b16 %v307
        %v471 = vunpack.c.l.b16 %v308
        %v472 = vunpack.c.h.b16 %v308
        %v473 = vunpack.c.l.b16 %v309
        %v474 = vunpack.c.h.b16 %v309
        %v475 = vunpack.c.l.b16 %v310
        %v476 = vunpack.c.h.b16 %v310
        %v477 = vunpack.c.l.b16 %v311
        %v478 = vunpack.c.h.b16 %v311
        %v479 = vunpack.c.l.b16 %v312
        %v480 = vunpack.c.h.b16 %v312
        %v481 = vunpack.c.l.b16 %v313
        %v482 = vunpack.c.h.b16 %v313
        %v483 = vunpack.c.l.b16 %v314
        %v484 = vunpack.c.h.b16 %v314
        %v485 = vunpack.c.l.b16 %v315
        %v486 = vunpack.c.h.b16 %v315
        %v487 = vunpack.c.l.b16 %v316
        %v488 = vunpack.c.h.b16 %v316
        %v489 = vunpack.c.l.b16 %v317
        %v490 = vunpack.c.h.b16 %v317
        %v491 = vunpack.c.l.b16 %v318
        %v492 = vunpack.c.h.b16 %v318
        %v493 = vunpack.c.l.b16 %v319
        %v494 = vunpack.c.h.b16 %v319
        %v495 = vunpack.c.l.b16 %v320
        %v496 = vunpack.c.h.b16 %v320
        %v497 = vunpack.c.l.b16 %v321
        %v498 = vunpack.c.h.b16 %v321
        %v499 = vunpack.c.l.b16 %v322
        %v500 = vunpack.c.h.b16 %v322
        %v501 = vunpack.c.l.b16 %v323
        %v502 = vunpack.c.h.b16 %v323
        %v503 = vunpack.c.l.b16 %v324
        %v504 = vunpack.c.h.b16 %v324
        %v505 = vunpack.c.l.b16 %v325
        %v506 = vunpack.c.h.b16 %v325
        %v507 = vunpack.c.l.b16 %v326
        %v508 = vunpack.c.h.b16 %v326
        %v509 = vunpack.c.l.b16 %v327
        %v510 = vunpack.c.h.b16 %v327
        %v511 = vunpack.c.l.b16 %v328
        %v512 = vunpack.c.h.b16 %v328
        %v513 = vunpack.c.l.b16 %v329
        %v514 = vunpack.c.h.b16 %v329
        %v515 = vunpack.c.l.b16 %v330
        %v516 = vunpack.c.h.b16 %v330
        %v517 = vunpack.c.l.b16 %v331
        %v518 = vunpack.c.h.b16 %v331
        %v519 = vunpack.c.l.b16 %v332
        %v520 = vunpack.c.h.b16 %v332
        %v521 = vunpack.c.l.b16 %v333
        %v522 = vunpack.c.h.b16 %v333
        %v523 = vunpack.c.l.b16 %v334
        %v524 = vunpack.c.h.b16 %v334
        %v525 = vunpack.c.l.b16 %v335
        %v526 = vunpack.c.h.b16 %v335
        %v527 = vunpack.c.l.b16 %v336
        %v528 = vunpack.c.h.b16 %v336
        %v529 = vunpack.c.l.b16 %v337
        %v530 = vunpack.c.h.b16 %v337
        %v531 = vunpack.c.l.b16 %v338
        %v532 = vunpack.c.h.b16 %v338
        %v533 = vunpack.c.l.b16 %v339
        %v534 = vunpack.c.h.b16 %v339
        %v535 = vunpack.c.l.b16 %v340
        %v536 = vunpack.c.h.b16 %v340
        %v537 = vunpack.c.l.b16 %v341
        %v538 = vunpack.c.h.b16 %v341
        %v539 = vunpack.c.l.b16 %v342
        %v540 = vunpack.c.h.b16 %v342
        %v541 = vunpack.c.l.b16 %v343
        %v542 = vunpack.c.h.b16 %v343
        %v543 = vunpack.c.l.b16 %v344
        %v544 = vunpack.c.h.b16 %v344
        %v545 = vunpack.c.l.b16 %v345
        %v546 = vunpack.c.h.b16 %v345
        %v547 = vunpack.c.l.b16 %v346
        %v548 = vunpack.c.h.b16 %v346
        %v549 = vunpack.c.l.b16 %v347
        %v550 = vunpack.c.h.b16 %v347
        %v551 = vunpack.c.l.b16 %v348
        %v552 = vunpack.c.h.b16 %v348
        %v553 = vunpack.c.l.b16 %v349
        %v554 = vunpack.c.h.b16 %v349
        %v555 = vunpack.c.l.b16 %v350
        %v556 = vunpack.c.h.b16 %v350
        %v557 = vunpack.c.l.b16 %v351
        %v558 = vunpack.c.h.b16 %v351
        %v559 = vunpack.c.l.b16 %v352
        %v560 = vunpack.c.h.b16 %v352
        %v561 = vunpack.c.l.b16 %v353
        %v562 = vunpack.c.h.b16 %v353
        %v563 = vunpack.c.l.b16 %v354
        %v564 = vunpack.c.h.b16 %v354
        %v565 = vunpack.c.l.b16 %v355
        %v566 = vunpack.c.h.b16 %v355
        %v567 = vunpack.c.l.b16 %v356
        %v568 = vunpack.c.h.b16 %v356
        %v569 = vpack.c.b16 %v443, %v441
        %v570 = vpack.c.b16 %v444, %v442
        %v571 = vpack.c.b16 %v447, %v445
        %v572 = vpack.c.b16 %v448, %v446
        %v573 = vpack.c.b16 %v451, %v449
        %v574 = vpack.c.b16 %v452, %v450
        %v575 = vpack.c.b16 %v455, %v453
        %v576 = vpack.c.b16 %v456, %v454
        %v577 = vpack.c.b16 %v459, %v457
        %v578 = vpack.c.b16 %v460, %v458
        %v579 = vpack.c.b16 %v463, %v461
        %v580 = vpack.c.b16 %v464, %v462
        %v581 = vpack.c.b16 %v467, %v465
        %v582 = vpack.c.b16 %v468, %v466
        %v583 = vpack.c.b16 %v471, %v469
        %v584 = vpack.c.b16 %v472, %v470
        %v585 = vpack.c.b16 %v475, %v473
        %v586 = vpack.c.b16 %v476, %v474
        %v587 = vpack.c.b16 %v479, %v477
        %v588 = vpack.c.b16 %v480, %v478
        %v589 = vpack.c.b16 %v483, %v481
        %v590 = vpack.c.b16 %v484, %v482
        %v591 = vpack.c.b16 %v487, %v485
        %v592 = vpack.c.b16 %v488, %v486
        %v593 = vpack.c.b16 %v491, %v489
        %v594 = vpack.c.b16 %v492, %v490
        %v595 = vpack.c.b16 %v495, %v493
        %v596 = vpack.c.b16 %v496, %v494
        %v597 = vpack.c.b16 %v499, %v497
        %v598 = vpack.c.b16 %v500, %v498
        %v599 = vpack.c.b16 %v503, %v501
        %v600 = vpack.c.b16 %v504, %v502
        %v601 = vpack.c.b16 %v507, %v505
        %v602 = vpack.c.b16 %v508, %v506
        %v603 = vpack.c.b16 %v511, %v509
        %v604 = vpack.c.b16 %v512, %v510
        %v605 = vpack.c.b16 %v515, %v513
        %v606 = vpack.c.b16 %v516, %v514
        %v607 = vpack.c.b16 %v519, %v517
        %v608 = vpack.c.b16 %v520, %v518
        %v609 = vpack.c.b16 %v523, %v521
        %v610 = vpack.c.b16 %v524, %v522
        %v611 = vpack.c.b16 %v527, %v525
        %v612 = vpack.c.b16 %v528, %v526
        %v613 = vpack.c.b16 %v531, %v529
        %v614 = vpack.c.b16 %v532, %v530
        %v615 = vpack.c.b16 %v535, %v533
        %v616 = vpack.c.b16 %v536, %v534
        %v617 = vpack.c.b16 %v539, %v537
        %v618 = vpack.c.b16 %v540, %v538
        %v619 = vpack.c.b16 %v543, %v541
        %v620 = vpack.c.b16 %v544, %v542
        %v621 = vpack.c.b16 %v547, %v545
        %v622 = vpack.c.b16 %v548, %v546
        %v623 = vpack.c.b16 %v551, %v549
        %v624 = vpack.c.b16 %v552, %v550
        %v625 = vpack.c.b16 %v555, %v553
        %v626 = vpack.c.b16 %v556, %v554
        %v627 = vpack.c.b16 %v559, %v557
        %v628 = vpack.c.b16 %v560, %v558
        %v629 = vpack.c.b16 %v563, %v561
        %v630 = vpack.c.b16 %v564, %v562
        %v631 = vpack.c.b16 %v567, %v565
        %v632 = vpack.c.b16 %v568, %v566
        %697 = vmatpush.bf16.msra.mxu0 %v583
        %698 = vmatpush.bf16.msra.mxu0 %v581
        %699 = vmatpush.bf16.msra.mxu0 %v579
        %700 = vmatpush.bf16.msra.mxu0 %v577
        %701 = vmatpush.bf16.msra.mxu0 %v575
        %702 = vmatpush.bf16.msra.mxu0 %v573
        %703 = vmatpush.bf16.msra.mxu0 %v571
        %704 = vmatpush.bf16.msra.mxu0 %v569
        %705 = vmatmul.bf16.gmra.mxu0 %v369
        %v706 = vpop.f32.mrf.mxu0
        %v707 = vadd.f32 %v359, %v706
        %v708 = vpop.f32.mrf.mxu0
        %709 = vdwg.mxu0
        %710 = vmatpush.bf16.msra.mxu0 %v599
        %711 = vmatpush.bf16.msra.mxu0 %v597
        %712 = vmatpush.bf16.msra.mxu0 %v595
        %713 = vmatpush.bf16.msra.mxu0 %v593
        %714 = vmatpush.bf16.msra.mxu0 %v591
        %715 = vmatpush.bf16.msra.mxu0 %v589
        %716 = vmatpush.bf16.msra.mxu0 %v587
        %717 = vmatpush.bf16.msra.mxu0 %v585
        %718 = vmatmul.bf16.gmra.mxu0 %v370
        %v719 = vpop.f32.mrf.mxu0
        %v720 = vadd.f32 %v707, %v719
        %v721 = vpop.f32.mrf.mxu0
        %722 = vdwg.mxu0
        %723 = vmatpush.bf16.msra.mxu0 %v615
        %724 = vmatpush.bf16.msra.mxu0 %v613
        %725 = vmatpush.bf16.msra.mxu0 %v611
        %726 = vmatpush.bf16.msra.mxu0 %v609
        %727 = vmatpush.bf16.msra.mxu0 %v607
        %728 = vmatpush.bf16.msra.mxu0 %v605
        %729 = vmatpush.bf16.msra.mxu0 %v603
        %730 = vmatpush.bf16.msra.mxu0 %v601
        %731 = vmatmul.bf16.gmra.mxu0 %v371
        %v732 = vpop.f32.mrf.mxu0
        %v733 = vadd.f32 %v720, %v732
        %v734 = vpop.f32.mrf.mxu0
        %735 = vdwg.mxu0
        %736 = vmatpush.bf16.msra.mxu0 %v631
        %737 = vmatpush.bf16.msra.mxu0 %v629
        %738 = vmatpush.bf16.msra.mxu0 %v627
        %739 = vmatpush.bf16.msra.mxu0 %v625
        %740 = vmatpush.bf16.msra.mxu0 %v623
        %741 = vmatpush.bf16.msra.mxu0 %v621
        %742 = vmatpush.bf16.msra.mxu0 %v619
        %743 = vmatpush.bf16.msra.mxu0 %v617
        %744 = vmatmul.bf16.gmra.mxu0 %v372
        %v745 = vpop.f32.mrf.mxu0
        %v746 = vadd.f32 %v733, %v745
        %v747 = vpop.f32.mrf.mxu0
        %748 = vdwg.mxu0
        %749 = vmatpush.bf16.msra.mxu0 %v584
        %750 = vmatpush.bf16.msra.mxu0 %v582
        %751 = vmatpush.bf16.msra.mxu0 %v580
        %752 = vmatpush.bf16.msra.mxu0 %v578
        %753 = vmatpush.bf16.msra.mxu0 %v576
        %754 = vmatpush.bf16.msra.mxu0 %v574
        %755 = vmatpush.bf16.msra.mxu0 %v572
        %756 = vmatpush.bf16.msra.mxu0 %v570
        %757 = vmatmul.bf16.gmra.mxu0 %v369
        %v758 = vpop.f32.mrf.mxu0
        %v759 = vadd.f32 %v360, %v758
        %v760 = vpop.f32.mrf.mxu0
        %761 = vdwg.mxu0
        %762 = vmatpush.bf16.msra.mxu0 %v600
        %763 = vmatpush.bf16.msra.mxu0 %v598
        %764 = vmatpush.bf16.msra.mxu0 %v596
        %765 = vmatpush.bf16.msra.mxu0 %v594
        %766 = vmatpush.bf16.msra.mxu0 %v592
        %767 = vmatpush.bf16.msra.mxu0 %v590
        %768 = vmatpush.bf16.msra.mxu0 %v588
        %769 = vmatpush.bf16.msra.mxu0 %v586
        %770 = vmatmul.bf16.gmra.mxu0 %v370
        %v771 = vpop.f32.mrf.mxu0
        %v772 = vadd.f32 %v759, %v771
        %v773 = vpop.f32.mrf.mxu0
        %774 = vdwg.mxu0
        %775 = vmatpush.bf16.msra.mxu0 %v616
        %776 = vmatpush.bf16.msra.mxu0 %v614
        %777 = vmatpush.bf16.msra.mxu0 %v612
        %778 = vmatpush.bf16.msra.mxu0 %v610
        %779 = vmatpush.bf16.msra.mxu0 %v608
        %780 = vmatpush.bf16.msra.mxu0 %v606
        %781 = vmatpush.bf16.msra.mxu0 %v604
        %782 = vmatpush.bf16.msra.mxu0 %v602
        %783 = vmatmul.bf16.gmra.mxu0 %v371
        %v784 = vpop.f32.mrf.mxu0
        %v785 = vadd.f32 %v772, %v784
        %v786 = vpop.f32.mrf.mxu0
        %787 = vdwg.mxu0
        %788 = vmatpush.bf16.msra.mxu0 %v632
        %789 = vmatpush.bf16.msra.mxu0 %v630
        %790 = vmatpush.bf16.msra.mxu0 %v628
        %791 = vmatpush.bf16.msra.mxu0 %v626
        %792 = vmatpush.bf16.msra.mxu0 %v624
        %793 = vmatpush.bf16.msra.mxu0 %v622
        %794 = vmatpush.bf16.msra.mxu0 %v620
        %795 = vmatpush.bf16.msra.mxu0 %v618
        %796 = vmatmul.bf16.gmra.mxu0 %v372
        %v797 = vpop.f32.mrf.mxu0
        %v798 = vadd.f32 %v785, %v797
        %v799 = vpop.f32.mrf.mxu0
        %800 = vdwg.mxu0
        %v801 = vmax.f32 %v746, 0.0
        %v802 = vmax.f32 %v798, 0.0
        %v803 = vpack.c.bf16 %v801, %v801
        %v804 = vpack.c.bf16 %v802, %v802
        %v805 = vld [vmem:[#allocation8] sm:$0xf]
        %v806 = vld [vmem:[#allocation8 + $0x4] sm:$0xf]
        %v807 = vld [vmem:[#allocation8 + $0x8] sm:$0xf]
        %v808 = vld [vmem:[#allocation8 + $0xc] sm:$0xf]
        %v809 = vld [vmem:[#allocation8 + $0x10] sm:$0xf]
        %v810 = vld [vmem:[#allocation8 + $0x14] sm:$0xf]
        %v811 = vld [vmem:[#allocation8 + $0x18] sm:$0xf]
        %v812 = vld [vmem:[#allocation8 + $0x1c] sm:$0xf]
        %v813 = vld [vmem:[#allocation8 + $0x20] sm:$0xf]
        %v814 = vld [vmem:[#allocation8 + $0x24] sm:$0xf]
        %v815 = vld [vmem:[#allocation8 + $0x28] sm:$0xf]
        %v816 = vld [vmem:[#allocation8 + $0x2c] sm:$0xf]
        %v817 = vld [vmem:[#allocation8 + $0x30] sm:$0xf]
        %v818 = vld [vmem:[#allocation8 + $0x34] sm:$0xf]
        %v819 = vld [vmem:[#allocation8 + $0x38] sm:$0xf]
        %v820 = vld [vmem:[#allocation8 + $0x3c] sm:$0xf]
        %v821 = vld [vmem:[#allocation8 + $0x40] sm:$0xf]
        %v822 = vld [vmem:[#allocation8 + $0x44] sm:$0xf]
        %v823 = vld [vmem:[#allocation8 + $0x48] sm:$0xf]
        %v824 = vld [vmem:[#allocation8 + $0x4c] sm:$0xf]
        %v825 = vld [vmem:[#allocation8 + $0x50] sm:$0xf]
        %v826 = vld [vmem:[#allocation8 + $0x54] sm:$0xf]
        %v827 = vld [vmem:[#allocation8 + $0x58] sm:$0xf]
        %v828 = vld [vmem:[#allocation8 + $0x5c] sm:$0xf]
        %v829 = vld [vmem:[#allocation8 + $0x60] sm:$0xf]
        %v830 = vld [vmem:[#allocation8 + $0x64] sm:$0xf]
        %v831 = vld [vmem:[#allocation8 + $0x68] sm:$0xf]
        %v832 = vld [vmem:[#allocation8 + $0x6c] sm:$0xf]
        %v833 = vld [vmem:[#allocation8 + $0x70] sm:$0xf]
        %v834 = vld [vmem:[#allocation8 + $0x74] sm:$0xf]
        %v835 = vld [vmem:[#allocation8 + $0x78] sm:$0xf]
        %v836 = vld [vmem:[#allocation8 + $0x7c] sm:$0xf]
        %v837 = vld [vmem:[%s4] sm:$0x1]
        %v839 = vperm.slane %v837, 0
        %v873 = vunpack.c.l.b16 %v805
        %v874 = vunpack.c.l.b16 %v806
        %v875 = vunpack.c.l.b16 %v807
        %v876 = vunpack.c.l.b16 %v808
        %v877 = vunpack.c.l.b16 %v809
        %v878 = vunpack.c.l.b16 %v810
        %v879 = vunpack.c.l.b16 %v811
        %v880 = vunpack.c.l.b16 %v812
        %v881 = vunpack.c.l.b16 %v813
        %v882 = vunpack.c.l.b16 %v814
        %v883 = vunpack.c.l.b16 %v815
        %v884 = vunpack.c.l.b16 %v816
        %v885 = vunpack.c.l.b16 %v817
        %v886 = vunpack.c.l.b16 %v818
        %v887 = vunpack.c.l.b16 %v819
        %v888 = vunpack.c.l.b16 %v820
        %v889 = vunpack.c.l.b16 %v821
        %v890 = vunpack.c.l.b16 %v822
        %v891 = vunpack.c.l.b16 %v823
        %v892 = vunpack.c.l.b16 %v824
        %v893 = vunpack.c.l.b16 %v825
        %v894 = vunpack.c.l.b16 %v826
        %v895 = vunpack.c.l.b16 %v827
        %v896 = vunpack.c.l.b16 %v828
        %v897 = vunpack.c.l.b16 %v829
        %v898 = vunpack.c.l.b16 %v830
        %v899 = vunpack.c.l.b16 %v831
        %v900 = vunpack.c.l.b16 %v832
        %v901 = vunpack.c.l.b16 %v833
        %v902 = vunpack.c.l.b16 %v834
        %v903 = vunpack.c.l.b16 %v835
        %v904 = vunpack.c.l.b16 %v836
        %v905 = vpack.c.b16 %v874, %v873
        %v906 = vpack.c.b16 %v876, %v875
        %v907 = vpack.c.b16 %v878, %v877
        %v908 = vpack.c.b16 %v880, %v879
        %v909 = vpack.c.b16 %v882, %v881
        %v910 = vpack.c.b16 %v884, %v883
        %v911 = vpack.c.b16 %v886, %v885
        %v912 = vpack.c.b16 %v888, %v887
        %v913 = vpack.c.b16 %v890, %v889
        %v914 = vpack.c.b16 %v892, %v891
        %v915 = vpack.c.b16 %v894, %v893
        %v916 = vpack.c.b16 %v896, %v895
        %v917 = vpack.c.b16 %v898, %v897
        %v918 = vpack.c.b16 %v900, %v899
        %v919 = vpack.c.b16 %v902, %v901
        %v920 = vpack.c.b16 %v904, %v903
        %937 = vmatpush.bf16.msra.mxu0 %v912
        %938 = vmatpush.bf16.msra.mxu0 %v911
        %939 = vmatpush.bf16.msra.mxu0 %v910
        %940 = vmatpush.bf16.msra.mxu0 %v909
        %941 = vmatpush.bf16.msra.mxu0 %v908
        %942 = vmatpush.bf16.msra.mxu0 %v907
        %943 = vmatpush.bf16.msra.mxu0 %v906
        %944 = vmatpush.bf16.msra.mxu0 %v905
        %945 = vmatmul.bf16.gmra.mxu0 %v803
        %v946 = vpop.f32.mrf.mxu0
        %v947 = vadd.f32 %v839, %v946
        %v948 = vpop.f32.mrf.mxu0
        %949 = vdwg.mxu0
        %950 = vmatpush.bf16.msra.mxu0 %v920
        %951 = vmatpush.bf16.msra.mxu0 %v919
        %952 = vmatpush.bf16.msra.mxu0 %v918
        %953 = vmatpush.bf16.msra.mxu0 %v917
        %954 = vmatpush.bf16.msra.mxu0 %v916
        %955 = vmatpush.bf16.msra.mxu0 %v915
        %956 = vmatpush.bf16.msra.mxu0 %v914
        %957 = vmatpush.bf16.msra.mxu0 %v913
        %958 = vmatmul.bf16.gmra.mxu0 %v804
        %v959 = vpop.f32.mrf.mxu0
        %v960 = vadd.f32 %v947, %v959
        %v961 = vpop.f32.mrf.mxu0
        %962 = vdwg.mxu0
        %v963 = vmax.f32 %v960, 0.0
        %964 = vst [vmem:[%s290] sm:$0xff] %v963
        %s965 = sand.u32 %s142, 1
        %s966 = scalar_lea.sflag [#allocation4], %s965
        %s967 = sand.u32 %s142, 1
        %s968 = smul.addr %s967, 8
        %s969 = scalar_lea.vmem [#allocation10], %s968
        // Predicated region
        $region57: #{tpu_custom_call.1} parent=39 // pred_check
          %p970 = pneg %p152
        $region58: #{tpu_custom_call.1} parent=39 // pred_check_branch
          %972 = sbr.rel (%p970) target = $region60
        $region59: #{tpu_custom_call.1} parent=39 // pred_region
          %974 = vsyncadd %s966, 0
          %s975 = smul.addr %s24, 8
          %s976 = scalar_lea.hbm %s5, %s975
          %s978 = sshll.u32 %s969, 4
          %s979 = int_to_ptr.vmem [resolvable:$true] %s978
          %s980 = sshll.u32 %s976, 4
          %s981 = int_to_ptr.hbm [resolvable:$true] %s980
          %983 = dma.vmem_to_hbm [thread:$0]  %s979, 128, %s981, %s966
        $region60: #{tpu_custom_call.1} parent=39 // pred_fallthru
          _
      $region40: #{tpu_custom_call.1} parent=5 // pred_fallthru
        _
      %p984 = scmp.le.s32.totalorder 2, %s19
      // Predicated region
      $region61: #{tpu_custom_call.1} parent=5 // pred_check
        %p985 = pneg %p984
      $region62: #{tpu_custom_call.1} parent=5 // pred_check_branch
        %987 = sbr.rel (%p985) target = $region64
      $region63: #{tpu_custom_call.1} parent=5 // pred_region
        %s988 = ssub.s32 %s19, 2
        // Predicated region
        $region65: #{tpu_custom_call.1} parent=63 // pred_check
          %p989 = pneg %p158
        $region66: #{tpu_custom_call.1} parent=63 // pred_check_branch
          %991 = sbr.rel (%p989) target = $region68
        $region67: #{tpu_custom_call.1} parent=63 // pred_region
          %s992 = sand.u32 %s143, 1
          %s993 = scalar_lea.sflag [#allocation4], %s992
          %s994 = sand.u32 %s143, 1
          %s995 = smul.addr %s994, 8
          %s996 = scalar_lea.vmem [#allocation10], %s995
          %998 = dma.done %s993, 128
        $region68: #{tpu_custom_call.1} parent=63 // pred_fallthru
          _
      $region64: #{tpu_custom_call.1} parent=5 // pred_fallthru
        _
    $region6: #{tpu_custom_call.1} parent=1 // loop_footer
      %s23 = sadd.s32 1, %s19
    $region7: #{tpu_custom_call.1} parent=1 // loop_footer_branch
      %18 = sbr.rel target = $region3
    $region8: #{tpu_custom_call.1} parent=1 // loop_exit
      _
    %999 = vsyncpa [#allocation3], 1
    %s1000 = scalar_lea.sflag [#allocation3], 1
    %1001 = vsyncpa %s1000, 1
    %1002 = vsyncpa [#allocation6], 1
    %1003 = vsyncpa [#allocation9], 1
    %1004 = vsyncpa [#allocation4], 1
    %s1005 = scalar_lea.sflag [#allocation4], 1
    %1006 = vsyncpa %s1005, 1

</llo_original>
